<compile_context>
chip_gen: v6e
topology: v6e:2x2x1
jax: 0.10.0
libtpu: 0.0.40
codegen_flags: <defaults>
</compile_context>

<pallas_src>
import functools
import math

import jax
import jax.numpy as jnp
from jax.experimental import pallas as pl
from jax.experimental.pallas import tpu as pltpu


def _round_up(x, m):
    return ((x + m - 1) // m) * m


def _gelu(h, approximate):
    if approximate:
        # tanh-form GELU: lowers to the EUP transcendental slot (cheap on VALU),
        # numerics differ slightly from nn.GELU() default.
        return jax.nn.gelu(h, approximate=True)
    # exact erf GELU -- matches PyTorch nn.GELU() default.
    return 0.5 * h * (1.0 + jax.lax.erf(h * (1.0 / math.sqrt(2.0))))


# ----------------------------- kernels -------------------------------------


def _mlp_resident_kernel(x_ref, w1_ref, b1_ref, w2_ref, b2_ref, o_ref, *,
                         approx_gelu, compute_dtype):
    """Fast path: both weight matrices VMEM-resident; fused fc1->gelu->fc2."""
    x = x_ref[...]
    w1 = w1_ref[...]
    w2 = w2_ref[...]
    if compute_dtype is not None:
        x = x.astype(compute_dtype)
        w1 = w1.astype(compute_dtype)
        w2 = w2.astype(compute_dtype)

    h = jnp.dot(x, w1, preferred_element_type=jnp.float32)
    h = h + b1_ref[...].astype(jnp.float32)
    h = _gelu(h, approx_gelu)
    # dropout(p=0.0) is the identity.
    # TODO(synk): dropout with p > 0 would need pltpu.prng_seed / prng_random_bits.
    h = h.astype(w2.dtype)
    o = jnp.dot(h, w2, preferred_element_type=jnp.float32)
    o_ref[...] = (o + b2_ref[...].astype(jnp.float32)).astype(o_ref.dtype)


def _mlp_streaming_kernel(x_ref, w1_ref, b1_ref, w2_ref, b2_ref, o_ref,
                          acc_ref, *, approx_gelu, compute_dtype):
    """Fallback: hidden dim streamed along grid axis 1, f32 accumulator."""
    h_idx = pl.program_id(1)

    @pl.when(h_idx == 0)
    def _init():
        acc_ref[...] = jnp.zeros_like(acc_ref)

    x = x_ref[...]
    w1 = w1_ref[...]
    w2 = w2_ref[...]
    if compute_dtype is not None:
        x = x.astype(compute_dtype)
        w1 = w1.astype(compute_dtype)
        w2 = w2.astype(compute_dtype)

    h = jnp.dot(x, w1, preferred_element_type=jnp.float32)
    h = h + b1_ref[...].astype(jnp.float32)
    h = _gelu(h, approx_gelu)
    # dropout(p=0.0) is the identity.
    acc_ref[...] += jnp.dot(h.astype(w2.dtype), w2,
                            preferred_element_type=jnp.float32)

    @pl.when(h_idx == pl.num_programs(1) - 1)
    def _finalize():
        o_ref[...] = (acc_ref[...] + b2_ref[...].astype(jnp.float32)
                      ).astype(o_ref.dtype)


# ----------------------------- wrapper --------------------------------------


def _vmem_budget_bytes():
    """~80% of physical VMEM (v5e/v6e 128 MiB -> ~102 MiB, v7x 64 MiB -> ~51 MiB)."""
    try:
        cap = int(pltpu.get_tpu_info().vmem_capacity_bytes)
    except Exception:
        cap = 64 << 20  # conservative fallback = v7x per-TensorCore VMEM
    return max(32 << 20, int(cap * 0.8))


def _maybe_pad2d(a, rows, cols):
    """Zero-pad a 2-D array up to (rows, cols); no-op (no copy) if already there."""
    if a.shape == (rows, cols):
        return a
    out = jnp.zeros((rows, cols), a.dtype)
    return out.at[: a.shape[0], : a.shape[1]].set(a)


def _resident_vmem_estimate(tm, in_pad, hid_pad, out_pad, dbytes):
    return (2 * tm * in_pad * dbytes          # x tile (double-buffered)
            + 2 * in_pad * hid_pad * dbytes   # w1 (resident; counted 2x to be safe)
            + 2 * 8 * hid_pad * dbytes        # b1
            + 2 * hid_pad * out_pad * dbytes  # w2
            + 2 * 8 * out_pad * dbytes        # b2
            + 2 * tm * out_pad * dbytes       # out tile
            + tm * hid_pad * 4                # f32 GELU intermediate
            + tm * hid_pad * dbytes           # cast copy feeding fc2
            + tm * out_pad * 4)               # f32 fc2 result before bias+cast


def _streaming_vmem_estimate(tm, th, in_pad, out_pad, dbytes):
    return (2 * tm * in_pad * dbytes          # x tile
            + 2 * in_pad * th * dbytes        # w1 slice
            + 2 * 8 * th * dbytes             # b1 slice
            + 2 * th * out_pad * dbytes       # w2 slice
            + 2 * 8 * out_pad * dbytes        # b2
            + 2 * tm * out_pad * dbytes       # out tile
            + tm * th * 4                     # f32 GELU intermediate
            + tm * th * dbytes                # cast copy
            + tm * out_pad * 4)               # f32 accumulator


def mlp_pallas(x, w1, b1, w2, b2, *, tm=None, th=None,
               approx_gelu=False, compute_dtype=None):
    """x: (..., in). w1:(in,hidden) b1:(hidden,) w2:(hidden,out) b2:(out,)."""
    in_features = x.shape[-1]
    hidden = w1.shape[1]
    out_features = w2.shape[1]
    lead = x.shape[:-1]

    x2 = x.reshape(-1, in_features)
    M = x2.shape[0]
    dt = x.dtype
    dbytes = jnp.dtype(dt).itemsize

    in_pad = _round_up(in_features, 128)
    out_pad = _round_up(out_features, 128)
    hid_pad0 = _round_up(hidden, 128)

    budget = _vmem_budget_bytes()

    # ---- row tile --------------------------------------------------------
    tm_req = 512 if tm is None else tm
    tm_eff = max(8, min(_round_up(tm_req, 8), _round_up(M, 8)))
    # v7x megacore: keep >=2 row blocks when M allows instead of one padded tile.
    if M > 8 and -(-M // tm_eff) < 2:
        tm_eff = max(8, _round_up(-(-M // 2), 8))

    # ---- choose path -------------------------------------------------------
    tm_fast = tm_eff
    while (_resident_vmem_estimate(tm_fast, in_pad, hid_pad0, out_pad, dbytes)
           > budget and tm_fast > 64):
        tm_fast = max(8, _round_up(tm_fast // 2, 8))
    use_resident = (_resident_vmem_estimate(tm_fast, in_pad, hid_pad0,
                                            out_pad, dbytes) <= budget)

    if use_resident:
        tm_eff = tm_fast
        hid_pad = hid_pad0
        m_pad = _round_up(M, tm_eff)
        grid = (m_pad // tm_eff,)
        est = _resident_vmem_estimate(tm_eff, in_pad, hid_pad, out_pad, dbytes)
        kernel = functools.partial(_mlp_resident_kernel,
                                   approx_gelu=approx_gelu,
                                   compute_dtype=compute_dtype)
        in_specs = [
            pl.BlockSpec((tm_eff, in_pad), lambda i: (i, 0)),
            pl.BlockSpec((in_pad, hid_pad), lambda i: (0, 0)),   # DMA'd once
            pl.BlockSpec((1, hid_pad), lambda i: (0, 0)),
            pl.BlockSpec((hid_pad, out_pad), lambda i: (0, 0)),  # DMA'd once
            pl.BlockSpec((1, out_pad), lambda i: (0, 0)),
        ]
        out_specs = pl.BlockSpec((tm_eff, out_pad), lambda i: (i, 0))
        scratch_shapes = []
        dim_sem = ("parallel",)
        weight_reads = 1
    else:
        th_req = 1024 if th is None else th
        th_eff = max(128, min(_round_up(th_req, 128), hid_pad0))
        while (_streaming_vmem_estimate(tm_eff, th_eff, in_pad, out_pad, dbytes)
               > budget and th_eff > 128):
            th_eff = max(128, _round_up(th_eff // 2, 128))
        while (_streaming_vmem_estimate(tm_eff, th_eff, in_pad, out_pad, dbytes)
               > budget and tm_eff > 8):
            tm_eff = max(8, _round_up(tm_eff // 2, 8))
        hid_pad = _round_up(hid_pad0, th_eff)
        m_pad = _round_up(M, tm_eff)
        grid = (m_pad // tm_eff, hid_pad // th_eff)
        est = _streaming_vmem_estimate(tm_eff, th_eff, in_pad, out_pad, dbytes)
        kernel = functools.partial(_mlp_streaming_kernel,
                                   approx_gelu=approx_gelu,
                                   compute_dtype=compute_dtype)
        in_specs = [
            pl.BlockSpec((tm_eff, in_pad), lambda i, h: (i, 0)),
            pl.BlockSpec((in_pad, th_eff), lambda i, h: (0, h)),
            pl.BlockSpec((1, th_eff), lambda i, h: (0, h)),
            pl.BlockSpec((th_eff, out_pad), lambda i, h: (h, 0)),
            pl.BlockSpec((1, out_pad), lambda i, h: (0, 0)),
        ]
        out_specs = pl.BlockSpec((tm_eff, out_pad), lambda i, h: (i, 0))
        scratch_shapes = [pltpu.VMEM((tm_eff, out_pad), jnp.float32)]
        dim_sem = ("parallel", "arbitrary")
        weight_reads = m_pad // tm_eff

    vmem_limit = int(min(budget, max(int(est * 1.5), 32 << 20)))

    # ---- lane/sublane-aligned slabs (no copy when already aligned) --------
    x_p = _maybe_pad2d(x2, m_pad, in_pad)
    w1_p = _maybe_pad2d(w1, in_pad, hid_pad)
    b1_p = _maybe_pad2d(b1.reshape(1, -1), 1, hid_pad)
    w2_p = _maybe_pad2d(w2, hid_pad, out_pad)
    b2_p = _maybe_pad2d(b2.reshape(1, -1), 1, out_pad)

    cost = pl.CostEstimate(
        flops=2 * m_pad * (in_pad * hid_pad + hid_pad * out_pad),
        transcendentals=m_pad * hid_pad,
        bytes_accessed=int(
            (m_pad * in_pad
             + weight_reads * (in_pad * hid_pad + hid_pad * out_pad)
             + hid_pad + out_pad
             + m_pad * out_pad) * dbytes),
    )

    out = pl.pallas_call(
        kernel,
        out_shape=jax.ShapeDtypeStruct((m_pad, out_pad), dt),
        grid_spec=pltpu.PrefetchScalarGridSpec(
            num_scalar_prefetch=0,
            grid=grid,
            in_specs=in_specs,
            out_specs=out_specs,
            scratch_shapes=scratch_shapes,
        ),
        compiler_params=pltpu.CompilerParams(
            dimension_semantics=dim_sem,
            vmem_limit_bytes=vmem_limit,
        ),
        cost_estimate=cost,
    )(x_p, w1_p, b1_p, w2_p, b2_p)

    if (m_pad, out_pad) != (M, out_features):
        out = out[:M, :out_features]
    return out.reshape(*lead, out_features)


def init_mlp_params(key, in_features, hidden_features, out_features,
                    dtype=jnp.float32):
    """Deterministic init mimicking nn.Linear; weights stored as (in, out)."""
    k1, k2, k3, k4 = jax.random.split(key, 4)
    lim1 = 1.0 / math.sqrt(in_features)
    lim2 = 1.0 / math.sqrt(hidden_features)
    w1 = jax.random.uniform(k1, (in_features, hidden_features), dtype, -lim1, lim1)
    b1 = jax.random.uniform(k2, (hidden_features,), dtype, -lim1, lim1)
    w2 = jax.random.uniform(k3, (hidden_features, out_features), dtype, -lim2, lim2)
    b2 = jax.random.uniform(k4, (out_features,), dtype, -lim2, lim2)
    return w1, b1, w2, b2


if __name__ == "__main__":
    key = jax.random.PRNGKey(0)
    kx, kp = jax.random.split(key)

    # small shapes consistent with the module's forward:
    # x: (batch=2, seq=8, in_features=32), hidden=64, out=in
    batch, seq, in_features = 2, 8, 32
    hidden_features = 64
    out_features = in_features

    x = jax.random.normal(kx, (batch, seq, in_features), jnp.float32)
    w1, b1, w2, b2 = init_mlp_params(kp, in_features, hidden_features,
                                     out_features)

    y = mlp_pallas(x, w1, b1, w2, b2)
    y = jax.block_until_ready(y)

    # pure-JAX reference check (exact erf GELU, drop=0.0)
    h_ref = x @ w1 + b1
    h_ref = 0.5 * h_ref * (1.0 + jax.lax.erf(h_ref / math.sqrt(2.0)))
    y_ref = h_ref @ w2 + b2
    assert y.shape == (batch, seq, out_features)
    assert jnp.allclose(y, y_ref, atol=1e-5, rtol=1e-5)

    print("KERNEL_OK")
</pallas_src>

<mosaic_0001>
module attributes {stable_mosaic.version = 11 : i64} {
  func.func @_mlp_resident_kernel(%arg0: i32, %arg1: memref<8x128xf32, #tpu.memory_space<vmem>>, %arg2: memref<128x128xf32, #tpu.memory_space<vmem>>, %arg3: memref<1x128xf32, #tpu.memory_space<vmem>>, %arg4: memref<128x128xf32, #tpu.memory_space<vmem>>, %arg5: memref<1x128xf32, #tpu.memory_space<vmem>>, %arg6: memref<8x128xf32, #tpu.memory_space<vmem>>) attributes {dimension_semantics = [#tpu.dimension_semantics<parallel>], iteration_bounds = array<i64: 2>, scalar_prefetch = 0 : i64, scratch_operands = 0 : i64, tpu.core_type = #tpu.core_type<tc>, window_params = [{transform_indices = @transform_0, window_bounds = array<i64: 8, 128>}, {pipeline_mode = #tpu.pipeline_mode<synchronous>, transform_indices = @transform_1, window_bounds = array<i64: 128, 128>}, {pipeline_mode = #tpu.pipeline_mode<synchronous>, transform_indices = @transform_2, window_bounds = array<i64: 1, 128>}, {pipeline_mode = #tpu.pipeline_mode<synchronous>, transform_indices = @transform_3, window_bounds = array<i64: 128, 128>}, {pipeline_mode = #tpu.pipeline_mode<synchronous>, transform_indices = @transform_4, window_bounds = array<i64: 1, 128>}, {transform_indices = @transform_5, window_bounds = array<i64: 8, 128>}]} {
    %c0 = arith.constant 0 : index
    %c0_0 = arith.constant 0 : index
    %0 = vector.load %arg1[%c0, %c0_0] : memref<8x128xf32, #tpu.memory_space<vmem>>, vector<8x128xf32>
    %c0_1 = arith.constant 0 : index
    %c0_2 = arith.constant 0 : index
    %1 = vector.load %arg2[%c0_1, %c0_2] : memref<128x128xf32, #tpu.memory_space<vmem>>, vector<128x128xf32>
    %c0_3 = arith.constant 0 : index
    %c0_4 = arith.constant 0 : index
    %2 = vector.load %arg4[%c0_3, %c0_4] : memref<128x128xf32, #tpu.memory_space<vmem>>, vector<128x128xf32>
    %cst = arith.constant dense<0.000000e+00> : vector<8x128xf32>
    %3 = tpu.matmul %0, %1, %cst {dimension_numbers = #tpu.dot_dimension_numbers<[1], [0], [0], [1], [0, 0, 1, 1], [], []>} : vector<8x128xf32>, vector<128x128xf32>, vector<8x128xf32> -> vector<8x128xf32>
    %c0_5 = arith.constant 0 : index
    %c0_6 = arith.constant 0 : index
    %4 = vector.load %arg3[%c0_5, %c0_6] : memref<1x128xf32, #tpu.memory_space<vmem>>, vector<1x128xf32>
    %5 = vector.broadcast %4 : vector<1x128xf32> to vector<8x128xf32>
    %6 = arith.addf %3, %5 : vector<8x128xf32>
    %cst_7 = arith.constant 5.000000e-01 : f32
    %7 = vector.broadcast %cst_7 : f32 to vector<8x128xf32>
    %8 = arith.mulf %7, %6 : vector<8x128xf32>
    %cst_8 = arith.constant 0.707106769 : f32
    %9 = vector.broadcast %cst_8 : f32 to vector<8x128xf32>
    %10 = arith.mulf %6, %9 : vector<8x128xf32>
    %11 = math.erf %10 : vector<8x128xf32>
    %cst_9 = arith.constant 1.000000e+00 : f32
    %12 = vector.broadcast %cst_9 : f32 to vector<8x128xf32>
    %13 = arith.addf %12, %11 : vector<8x128xf32>
    %14 = arith.mulf %8, %13 : vector<8x128xf32>
    %cst_10 = arith.constant dense<0.000000e+00> : vector<8x128xf32>
    %15 = tpu.matmul %14, %2, %cst_10 {dimension_numbers = #tpu.dot_dimension_numbers<[1], [0], [0], [1], [0, 0, 1, 1], [], []>} : vector<8x128xf32>, vector<128x128xf32>, vector<8x128xf32> -> vector<8x128xf32>
    %c0_11 = arith.constant 0 : index
    %c0_12 = arith.constant 0 : index
    %16 = vector.load %arg5[%c0_11, %c0_12] : memref<1x128xf32, #tpu.memory_space<vmem>>, vector<1x128xf32>
    %17 = vector.broadcast %16 : vector<1x128xf32> to vector<8x128xf32>
    %18 = arith.addf %15, %17 : vector<8x128xf32>
    %c0_13 = arith.constant 0 : index
    %c0_14 = arith.constant 0 : index
    %19 = vector.load %arg6[%c0_13, %c0_14] : memref<8x128xf32, #tpu.memory_space<vmem>>, vector<8x128xf32>
    tpu.vector_store %arg6[%c0_13, %c0_14], %18 {strides = array<i32>} : memref<8x128xf32, #tpu.memory_space<vmem>>, vector<8x128xf32>,
    return
  }
  func.func @transform_0(%arg0: i32) -> (i32, i32) {
    %c0_i32 = arith.constant 0 : i32
    %c0_i32_0 = arith.constant 0 : i32
    return %arg0, %c0_i32 : i32, i32
  }
  func.func @transform_1(%arg0: i32) -> (i32, i32) {
    %c0_i32 = arith.constant 0 : i32
    %c0_i32_0 = arith.constant 0 : i32
    %c0_i32_1 = arith.constant 0 : i32
    return %c0_i32, %c0_i32_0 : i32, i32
  }
  func.func @transform_2(%arg0: i32) -> (i32, i32) {
    %c0_i32 = arith.constant 0 : i32
    %c0_i32_0 = arith.constant 0 : i32
    %c0_i32_1 = arith.constant 0 : i32
    return %c0_i32, %c0_i32_0 : i32, i32
  }
  func.func @transform_3(%arg0: i32) -> (i32, i32) {
    %c0_i32 = arith.constant 0 : i32
    %c0_i32_0 = arith.constant 0 : i32
    %c0_i32_1 = arith.constant 0 : i32
    return %c0_i32, %c0_i32_0 : i32, i32
  }
  func.func @transform_4(%arg0: i32) -> (i32, i32) {
    %c0_i32 = arith.constant 0 : i32
    %c0_i32_0 = arith.constant 0 : i32
    %c0_i32_1 = arith.constant 0 : i32
    return %c0_i32, %c0_i32_0 : i32, i32
  }
  func.func @transform_5(%arg0: i32) -> (i32, i32) {
    %c0_i32 = arith.constant 0 : i32
    %c0_i32_0 = arith.constant 0 : i32
    return %arg0, %c0_i32 : i32, i32
  }
}

</mosaic_0001>

<llo_original>
// kernel: tpu_custom_call.1
$region0: #{tpu_custom_call.1}
  #allocation0 [shape = 'u32[]', space=smem, size = 0x4, offset = 0x4, fixed_abs, tag = 'smem constant byte address 0x4 - core index']
  #allocation1 [shape = 'u32[144,128]{1,0:T(1,128)}', space=vmem, size = 0x12000, scoped, tag = 'internal scratch']
  %s0 = inlined_call_operand.hbm [shape: f32[16,128], index: 0, kind: input, shape index: {}]
  %s1 = inlined_call_operand.hbm [shape: f32[128,128], index: 1, kind: input, shape index: {}]
  %s2 = inlined_call_operand.vmem [shape: f32[1,128], index: 2, kind: input, shape index: {}]
  %s3 = inlined_call_operand.hbm [shape: f32[128,128], index: 3, kind: input, shape index: {}]
  %s4 = inlined_call_operand.vmem [shape: f32[1,128], index: 4, kind: input, shape index: {}]
  %s5 = inlined_call_operand.hbm [shape: f32[16,128], index: 5, kind: output, shape index: {}]
  %s6 = sld [smem:[#allocation0]]
  $region65: #{tpu_custom_call.1} parent=0
    _
  %s8 = ssub.s32 1, %s6
  %s9 = scalar_select 0, %s8, %s6
  $region1: #{tpu_custom_call.1} parent=0
    #allocation2 [shape = 'u8[8192]{0}', space=vmem, size = 0x2000, scoped, tag = 'input window, operand 0']
    #allocation3 [shape = 's32[2]{0}', space=sflag, size = 0x8, scoped, tag = 'scoped memory for tpu_custom_call.1']
    #allocation4 [shape = 's32[2]{0}', space=sflag, size = 0x8, scoped, tag = 'scoped memory for tpu_custom_call.1']
    #allocation5 [shape = 'u8[65536]{0}', space=vmem, size = 0x10000, scoped, tag = 'input window, operand 1, single buffered']
    #allocation6 [shape = 's32[1]{0}', space=sflag, size = 0x4, scoped, tag = 'scoped memory for tpu_custom_call.1']
    #allocation7 [shape = 'u8[65536]{0}', space=vmem, size = 0x10000, scoped, tag = 'input window, operand 3, single buffered']
    #allocation8 [shape = 'u8[8192]{0}', space=vmem, size = 0x2000, scoped, tag = 'output window, operand 0']
    %10 = vsyncpa [#allocation3], 0
    %s11 = scalar_lea.sflag [#allocation3], 1
    %12 = vsyncpa %s11, 0
    %13 = vsyncpa [#allocation6], 0
    %14 = vsyncpa [#allocation4], 0
    %s15 = scalar_lea.sflag [#allocation4], 1
    %16 = vsyncpa %s15, 0
    loop: start=0, step=1, limit=4
    $region2: #{tpu_custom_call.1} parent=1 // loop_pre_header
      _
    $region3: #{tpu_custom_call.1} parent=1 // loop_header
      %s18 = sphi 0, %s22
      %p19 = scmp.ge.s32.totalorder %s18, 4
      %s28 = sphi 0, %s30
      %s31 = sphi 0, %s28
      %s32 = sphi 0, %s31
      %s48 = sphi 0, %s32
      %s52 = sphi 0, %s52
      %s54 = sphi 0, %s52
      %s55 = sphi 0, %s54
      %s69 = sphi 0, %s55
      %s73 = sphi 0, %s73
      %s75 = sphi 0, %s73
      %s76 = sphi 0, %s75
      %s90 = sphi 0, %s76
      %s94 = sphi 0, %s94
      %s96 = sphi 0, %s94
      %s97 = sphi 0, %s96
      %s111 = sphi 0, %s97
      %s115 = sphi 0, %s115
      %s117 = sphi 0, %s115
      %s118 = sphi 0, %s117
      %s132 = sphi 0, %s118
      %s138 = sphi 0, %s140
      %s141 = sphi 0, %s138
      %s142 = sphi 0, %s141
      %s158 = sphi 0, %s142
    $region4: #{tpu_custom_call.1} parent=1 // loop_header_branch
      %21 = sbr.rel (%p19) target = $region8
    $region5: #{tpu_custom_call.1} parent=1 // loop_body
      %s23 = ssub.s32 %s18, 1
      %s24 = ssub.s32 %s18, 2
      %s25 = sadd.s32 %s18, 1
      %s26 = ssub.s32 %s18, %s25
      %p27 = scmp.eq.s32.totalorder %s26, 0
      %s29 = sadd.s32 %s28, 1
      %s30 = scalar_select %p27, %s28, %s29
      %p33 = pneg %p27
      %p34 = scmp.eq.s32.totalorder %s18, 1
      %p35 = por %p33, %p34
      %p36 = scmp.ne.s32.totalorder %s28, %s31
      %p37 = scmp.eq.s32.totalorder %s18, 0
      %p38 = por %p36, %p37
      %p39 = scmp.ne.s32.totalorder %s28, %s31
      %p40 = scmp.eq.s32.totalorder %s23, 1
      %p41 = por %p39, %p40
      %p42 = scmp.ne.s32.totalorder %s31, %s32
      %p43 = scmp.eq.s32.totalorder %s23, 0
      %p44 = por %p42, %p43
      %p45 = scmp.ne.s32.totalorder %s31, %s32
      %p46 = scmp.eq.s32.totalorder %s24, 1
      %p47 = por %p45, %p46
      %p49 = scmp.ne.s32.totalorder %s32, %s48
      %p50 = scmp.eq.s32.totalorder %s24, 0
      %p51 = por %p49, %p50
      %s53 = sadd.s32 %s52, 1
      %p56 = scmp.eq.s32.totalorder %s18, 1
      %p57 = scmp.ne.s32.totalorder %s52, %s54
      %p58 = scmp.eq.s32.totalorder %s18, 0
      %p59 = por %p57, %p58
      %p60 = scmp.ne.s32.totalorder %s52, %s54
      %p61 = scmp.eq.s32.totalorder %s23, 1
      %p62 = por %p60, %p61
      %p63 = scmp.ne.s32.totalorder %s54, %s55
      %p64 = scmp.eq.s32.totalorder %s23, 0
      %p65 = por %p63, %p64
      %p66 = scmp.ne.s32.totalorder %s54, %s55
      %p67 = scmp.eq.s32.totalorder %s24, 1
      %p68 = por %p66, %p67
      %p70 = scmp.ne.s32.totalorder %s55, %s69
      %p71 = scmp.eq.s32.totalorder %s24, 0
      %p72 = por %p70, %p71
      %s74 = sadd.s32 %s73, 1
      %p77 = scmp.eq.s32.totalorder %s18, 1
      %p78 = scmp.ne.s32.totalorder %s73, %s75
      %p79 = scmp.eq.s32.totalorder %s18, 0
      %p80 = por %p78, %p79
      %p81 = scmp.ne.s32.totalorder %s73, %s75
      %p82 = scmp.eq.s32.totalorder %s23, 1
      %p83 = por %p81, %p82
      %p84 = scmp.ne.s32.totalorder %s75, %s76
      %p85 = scmp.eq.s32.totalorder %s23, 0
      %p86 = por %p84, %p85
      %p87 = scmp.ne.s32.totalorder %s75, %s76
      %p88 = scmp.eq.s32.totalorder %s24, 1
      %p89 = por %p87, %p88
      %p91 = scmp.ne.s32.totalorder %s76, %s90
      %p92 = scmp.eq.s32.totalorder %s24, 0
      %p93 = por %p91, %p92
      %s95 = sadd.s32 %s94, 1
      %p98 = scmp.eq.s32.totalorder %s18, 1
      %p99 = scmp.ne.s32.totalorder %s94, %s96
      %p100 = scmp.eq.s32.totalorder %s18, 0
      %p101 = por %p99, %p100
      %p102 = scmp.ne.s32.totalorder %s94, %s96
      %p103 = scmp.eq.s32.totalorder %s23, 1
      %p104 = por %p102, %p103
      %p105 = scmp.ne.s32.totalorder %s96, %s97
      %p106 = scmp.eq.s32.totalorder %s23, 0
      %p107 = por %p105, %p106
      %p108 = scmp.ne.s32.totalorder %s96, %s97
      %p109 = scmp.eq.s32.totalorder %s24, 1
      %p110 = por %p108, %p109
      %p112 = scmp.ne.s32.totalorder %s97, %s111
      %p113 = scmp.eq.s32.totalorder %s24, 0
      %p114 = por %p112, %p113
      %s116 = sadd.s32 %s115, 1
      %p119 = scmp.eq.s32.totalorder %s18, 1
      %p120 = scmp.ne.s32.totalorder %s115, %s117
      %p121 = scmp.eq.s32.totalorder %s18, 0
      %p122 = por %p120, %p121
      %p123 = scmp.ne.s32.totalorder %s115, %s117
      %p124 = scmp.eq.s32.totalorder %s23, 1
      %p125 = por %p123, %p124
      %p126 = scmp.ne.s32.totalorder %s117, %s118
      %p127 = scmp.eq.s32.totalorder %s23, 0
      %p128 = por %p126, %p127
      %p129 = scmp.ne.s32.totalorder %s117, %s118
      %p130 = scmp.eq.s32.totalorder %s24, 1
      %p131 = por %p129, %p130
      %p133 = scmp.ne.s32.totalorder %s118, %s132
      %p134 = scmp.eq.s32.totalorder %s24, 0
      %p135 = por %p133, %p134
      %s136 = ssub.s32 %s18, %s25
      %p137 = scmp.eq.s32.totalorder %s136, 0
      %s139 = sadd.s32 %s138, 1
      %s140 = scalar_select %p137, %s138, %s139
      %p143 = pneg %p137
      %p144 = scmp.eq.s32.totalorder %s18, 1
      %p145 = por %p143, %p144
      %p146 = scmp.ne.s32.totalorder %s138, %s141
      %p147 = scmp.eq.s32.totalorder %s18, 0
      %p148 = por %p146, %p147
      %p149 = scmp.ne.s32.totalorder %s138, %s141
      %p150 = scmp.eq.s32.totalorder %s23, 1
      %p151 = por %p149, %p150
      %p152 = scmp.ne.s32.totalorder %s141, %s142
      %p153 = scmp.eq.s32.totalorder %s23, 0
      %p154 = por %p152, %p153
      %p155 = scmp.ne.s32.totalorder %s141, %s142
      %p156 = scmp.eq.s32.totalorder %s24, 1
      %p157 = por %p155, %p156
      %p159 = scmp.ne.s32.totalorder %s142, %s158
      %p160 = scmp.eq.s32.totalorder %s24, 0
      %p161 = por %p159, %p160
      %p162 = scmp.le.s32.totalorder 1, %s18
      %p163 = scmp.lt.s32.totalorder %s18, 3
      %p164 = pnand %p162, %p163
      %p165 = pneg %p164
      // Predicated region
      $region9: #{tpu_custom_call.1} parent=5 // pred_check
        _
      $region10: #{tpu_custom_call.1} parent=5 // pred_check_branch
        %167 = sbr.rel (%p164) target = $region12
      $region11: #{tpu_custom_call.1} parent=5 // pred_region
        %s168 = ssub.s32 %s18, 1
        // Predicated region
        $region13: #{tpu_custom_call.1} parent=11 // pred_check
          %p169 = pneg %p65
        $region14: #{tpu_custom_call.1} parent=11 // pred_check_branch
          %171 = sbr.rel (%p169) target = $region16
        $region15: #{tpu_custom_call.1} parent=11 // pred_region
          %s173 = ssub.s32 2048, 2048
          %174 = vsyncadd [#allocation6], %s173
          %s175 = sshll.u32 [#allocation5], 4
          %s176 = int_to_ptr.vmem [resolvable:$true] %s175
          %181 = dma.hbm_to_vmem [thread:$0]  %s1, 2048, %s176, [#allocation6], 128, 128, 8
        $region16: #{tpu_custom_call.1} parent=11 // pred_fallthru
          _
        // Predicated region
        $region17: #{tpu_custom_call.1} parent=11 // pred_check
          %p182 = pneg %p86
        $region18: #{tpu_custom_call.1} parent=11 // pred_check_branch
          %184 = sbr.rel (%p182) target = $region20
        $region19: #{tpu_custom_call.1} parent=11 // pred_region
          _
        $region20: #{tpu_custom_call.1} parent=11 // pred_fallthru
          _
        // Predicated region
        $region21: #{tpu_custom_call.1} parent=11 // pred_check
          %p185 = pneg %p107
        $region22: #{tpu_custom_call.1} parent=11 // pred_check_branch
          %187 = sbr.rel (%p185) target = $region24
        $region23: #{tpu_custom_call.1} parent=11 // pred_region
          %s189 = ssub.s32 2048, 2048
          %190 = vsyncadd [#allocation6], %s189
          %s191 = sshll.u32 [#allocation7], 4
          %s192 = int_to_ptr.vmem [resolvable:$true] %s191
          %197 = dma.hbm_to_vmem [thread:$0]  %s3, 2048, %s192, [#allocation6], 128, 128, 8
        $region24: #{tpu_custom_call.1} parent=11 // pred_fallthru
          _
        // Predicated region
        $region25: #{tpu_custom_call.1} parent=11 // pred_check
          %p198 = pneg %p128
        $region26: #{tpu_custom_call.1} parent=11 // pred_check_branch
          %200 = sbr.rel (%p198) target = $region28
        $region27: #{tpu_custom_call.1} parent=11 // pred_region
          _
        $region28: #{tpu_custom_call.1} parent=11 // pred_fallthru
          _
      $region12: #{tpu_custom_call.1} parent=5 // pred_fallthru
        _
      %p201 = scmp.lt.s32.totalorder %s18, 2
      // Predicated region
      $region29: #{tpu_custom_call.1} parent=5 // pred_check
        %p202 = pneg %p201
      $region30: #{tpu_custom_call.1} parent=5 // pred_check_branch
        %204 = sbr.rel (%p202) target = $region32
      $region31: #{tpu_custom_call.1} parent=5 // pred_region
        // Predicated region
        $region33: #{tpu_custom_call.1} parent=31 // pred_check
          %p205 = pneg %p38
        $region34: #{tpu_custom_call.1} parent=31 // pred_check_branch
          %207 = sbr.rel (%p205) target = $region36
        $region35: #{tpu_custom_call.1} parent=31 // pred_region
          %s208 = sand.u32 %s28, 1
          %s209 = scalar_lea.sflag [#allocation3], %s208
          %s210 = sand.u32 %s28, 1
          %s211 = smul.addr %s210, 8
          %s212 = scalar_lea.vmem [#allocation2], %s211
          %s214 = ssub.s32 128, 128
          %215 = vsyncadd %s209, %s214
          %s216 = smul.addr %s18, 128
          %s217 = scalar_lea.hbm %s0, %s216
          %s219 = sshll.u32 %s212, 4
          %s220 = int_to_ptr.vmem [resolvable:$true] %s219
          %222 = dma.hbm_to_vmem [thread:$0]  %s217, 128, %s220, %s209
        $region36: #{tpu_custom_call.1} parent=31 // pred_fallthru
          _
      $region32: #{tpu_custom_call.1} parent=5 // pred_fallthru
        _
      %p223 = scmp.le.s32.totalorder 1, %s18
      %p224 = scmp.lt.s32.totalorder %s18, 3
      %p225 = pnand %p223, %p224
      %p226 = pneg %p225
      // Predicated region
      $region37: #{tpu_custom_call.1} parent=5 // pred_check
        _
      $region38: #{tpu_custom_call.1} parent=5 // pred_check_branch
        %228 = sbr.rel (%p225) target = $region40
      $region39: #{tpu_custom_call.1} parent=5 // pred_region
        %s229 = ssub.s32 %s18, 1
        %s230 = sand.u32 %s31, 1
        %s231 = scalar_lea.sflag [#allocation3], %s230
        %s232 = sand.u32 %s31, 1
        %s233 = smul.addr %s232, 8
        %s234 = scalar_lea.vmem [#allocation2], %s233
        // Predicated region
        $region41: #{tpu_custom_call.1} parent=39 // pred_check
          %p235 = pneg %p44
        $region42: #{tpu_custom_call.1} parent=39 // pred_check_branch
          %237 = sbr.rel (%p235) target = $region44
        $region43: #{tpu_custom_call.1} parent=39 // pred_region
          %238 = dma.done %s231, 128
        $region44: #{tpu_custom_call.1} parent=39 // pred_fallthru
          _
        // Predicated region
        $region45: #{tpu_custom_call.1} parent=39 // pred_check
          %p239 = pneg %p65
        $region46: #{tpu_custom_call.1} parent=39 // pred_check_branch
          %241 = sbr.rel (%p239) target = $region48
        $region47: #{tpu_custom_call.1} parent=39 // pred_region
          %242 = dma.done [#allocation6], 2048
        $region48: #{tpu_custom_call.1} parent=39 // pred_fallthru
          _
        // Predicated region
        $region49: #{tpu_custom_call.1} parent=39 // pred_check
          %p243 = pneg %p107
        $region50: #{tpu_custom_call.1} parent=39 // pred_check_branch
          %245 = sbr.rel (%p243) target = $region52
        $region51: #{tpu_custom_call.1} parent=39 // pred_region
          %246 = dma.done [#allocation6], 2048
        $region52: #{tpu_custom_call.1} parent=39 // pred_fallthru
          _
        %s247 = sand.u32 %s31, 1
        %s248 = scalar_lea.sflag [#allocation3], %s247
        %s249 = sand.u32 %s31, 1
        %s250 = smul.addr %s249, 8
        %s251 = scalar_lea.vmem [#allocation2], %s250
        %p252 = pneg %p44
        %p253 = pneg %p41
        %p254 = pneg %p65
        %p255 = pneg %p62
        %p256 = pneg %p86
        %p257 = pneg %p83
        %p258 = pneg %p107
        %p259 = pneg %p104
        %p260 = pneg %p128
        %p261 = pneg %p125
        %p262 = pneg %p154
        %p263 = pneg %p151
        %s264 = sand.u32 %s141, 1
        %s265 = scalar_lea.sflag [#allocation4], %s264
        %s266 = sand.u32 %s141, 1
        %s267 = smul.addr %s266, 8
        %s268 = scalar_lea.vmem [#allocation8], %s267
        %v269 = vld [vmem:[%s234] sm:$0xff]
        %v270 = vld [vmem:[#allocation5] sm:$0xff]
        %v271 = vld [vmem:[#allocation5 + $0x8] sm:$0xff]
        %v272 = vld [vmem:[#allocation5 + $0x10] sm:$0xff]
        %v273 = vld [vmem:[#allocation5 + $0x18] sm:$0xff]
        %v274 = vld [vmem:[#allocation5 + $0x20] sm:$0xff]
        %v275 = vld [vmem:[#allocation5 + $0x28] sm:$0xff]
        %v276 = vld [vmem:[#allocation5 + $0x30] sm:$0xff]
        %v277 = vld [vmem:[#allocation5 + $0x38] sm:$0xff]
        %v278 = vld [vmem:[#allocation5 + $0x40] sm:$0xff]
        %v279 = vld [vmem:[#allocation5 + $0x48] sm:$0xff]
        %v280 = vld [vmem:[#allocation5 + $0x50] sm:$0xff]
        %v281 = vld [vmem:[#allocation5 + $0x58] sm:$0xff]
        %v282 = vld [vmem:[#allocation5 + $0x60] sm:$0xff]
        %v283 = vld [vmem:[#allocation5 + $0x68] sm:$0xff]
        %v284 = vld [vmem:[#allocation5 + $0x70] sm:$0xff]
        %v285 = vld [vmem:[#allocation5 + $0x78] sm:$0xff]
        %v286 = vld [vmem:[#allocation7] sm:$0xff]
        %v287 = vld [vmem:[#allocation7 + $0x8] sm:$0xff]
        %v288 = vld [vmem:[#allocation7 + $0x10] sm:$0xff]
        %v289 = vld [vmem:[#allocation7 + $0x18] sm:$0xff]
        %v290 = vld [vmem:[#allocation7 + $0x20] sm:$0xff]
        %v291 = vld [vmem:[#allocation7 + $0x28] sm:$0xff]
        %v292 = vld [vmem:[#allocation7 + $0x30] sm:$0xff]
        %v293 = vld [vmem:[#allocation7 + $0x38] sm:$0xff]
        %v294 = vld [vmem:[#allocation7 + $0x40] sm:$0xff]
        %v295 = vld [vmem:[#allocation7 + $0x48] sm:$0xff]
        %v296 = vld [vmem:[#allocation7 + $0x50] sm:$0xff]
        %v297 = vld [vmem:[#allocation7 + $0x58] sm:$0xff]
        %v298 = vld [vmem:[#allocation7 + $0x60] sm:$0xff]
        %v299 = vld [vmem:[#allocation7 + $0x68] sm:$0xff]
        %v300 = vld [vmem:[#allocation7 + $0x70] sm:$0xff]
        %v301 = vld [vmem:[#allocation7 + $0x78] sm:$0xff]
        %v302 = vld [vmem:[%s2] sm:$0x1]
        %v304 = vlaneseq
        %v305 = vshrl.u32 %v304, 7
        %v306 = vsub.s32 0, %v305
        %v307 = vrot.slane %v302, %v306
        %309 = vmatprep.subr.mxu0 0.0
        %310 = vmatpush1.msra.mxu0 %v285
        %311 = vmatprep.subr.mxu0 0.0
        %312 = vmatpush1.msra.mxu0 %v284
        %313 = vmatprep.subr.mxu0 0.0
        %314 = vmatpush1.msra.mxu0 %v283
        %315 = vmatprep.subr.mxu0 0.0
        %316 = vmatpush1.msra.mxu0 %v282
        %317 = vmatprep.subr.mxu0 0.0
        %318 = vmatpush1.msra.mxu0 %v281
        %319 = vmatprep.subr.mxu0 0.0
        %320 = vmatpush1.msra.mxu0 %v280
        %321 = vmatprep.subr.mxu0 0.0
        %322 = vmatpush1.msra.mxu0 %v279
        %323 = vmatprep.subr.mxu0 0.0
        %324 = vmatpush1.msra.mxu0 %v278
        %325 = vmatprep.subr.mxu0 0.0
        %326 = vmatpush1.msra.mxu0 %v277
        %327 = vmatprep.subr.mxu0 0.0
        %328 = vmatpush1.msra.mxu0 %v276
        %329 = vmatprep.subr.mxu0 0.0
        %330 = vmatpush1.msra.mxu0 %v275
        %331 = vmatprep.subr.mxu0 0.0
        %332 = vmatpush1.msra.mxu0 %v274
        %333 = vmatprep.subr.mxu0 0.0
        %334 = vmatpush1.msra.mxu0 %v273
        %335 = vmatprep.subr.mxu0 0.0
        %336 = vmatpush1.msra.mxu0 %v272
        %337 = vmatprep.subr.mxu0 0.0
        %338 = vmatpush1.msra.mxu0 %v271
        %339 = vmatprep.subr.mxu0 0.0
        %340 = vmatpush1.msra.mxu0 %v270
        %341 = vmatprep.subr.mxu0 0.0
        %342 = vmatpush2.msra.mxu0 0.0
        %343 = vmatprep.subr.mxu0 0.0
        %344 = vmatpush2.msra.mxu0 0.0
        %345 = vmatprep.subr.mxu0 0.0
        %346 = vmatpush2.msra.mxu0 0.0
        %347 = vmatprep.subr.mxu0 0.0
        %348 = vmatpush2.msra.mxu0 0.0
        %349 = vmatprep.subr.mxu0 0.0
        %350 = vmatpush2.msra.mxu0 0.0
        %351 = vmatprep.subr.mxu0 0.0
        %352 = vmatpush2.msra.mxu0 0.0
        %353 = vmatprep.subr.mxu0 0.0
        %354 = vmatpush2.msra.mxu0 0.0
        %355 = vmatprep.subr.mxu0 0.0
        %356 = vmatpush2.msra.mxu0 0.0
        %357 = vmatprep.subr.mxu0 0.0
        %358 = vmatpush2.msra.mxu0 0.0
        %359 = vmatprep.subr.mxu0 0.0
        %360 = vmatpush2.msra.mxu0 0.0
        %361 = vmatprep.subr.mxu0 0.0
        %362 = vmatpush2.msra.mxu0 0.0
        %363 = vmatprep.subr.mxu0 0.0
        %364 = vmatpush2.msra.mxu0 0.0
        %365 = vmatprep.subr.mxu0 0.0
        %366 = vmatpush2.msra.mxu0 0.0
        %367 = vmatprep.subr.mxu0 0.0
        %368 = vmatpush2.msra.mxu0 0.0
        %369 = vmatprep.subr.mxu0 0.0
        %370 = vmatpush2.msra.mxu0 0.0
        %371 = vmatprep.subr.mxu0 0.0
        %372 = vmatpush2.msra.mxu0 0.0
        %373 = vmatprep.mubr.f32.mxu0 0.0
        %374 = vmatmul.mubr.f32.gmra.mxu0 %v269
        %v375 = vpop.f32.mrf.mxu0
        %v376 = vadd.f32 %v307, %v375
        %v377 = vpop.f32.mrf.mxu0
        %378 = vdwg.mxu0
        %v379 = vmul.f32 %v376, 0.5
        %v380 = vmul.f32 %v376, 0.70710677
        %v381 = verf.f32.pop %v380
        %v382 = vadd.f32 %v381, 1.0
        %v383 = vmul.f32 %v379, %v382
        %v384 = vld [vmem:[%s4] sm:$0x1]
        %v386 = vlaneseq
        %v387 = vshrl.u32 %v386, 7
        %v388 = vsub.s32 0, %v387
        %v389 = vrot.slane %v384, %v388
        %391 = vmatprep.subr.mxu0 0.0
        %392 = vmatpush1.msra.mxu0 %v301
        %393 = vmatprep.subr.mxu0 0.0
        %394 = vmatpush1.msra.mxu0 %v300
        %395 = vmatprep.subr.mxu0 0.0
        %396 = vmatpush1.msra.mxu0 %v299
        %397 = vmatprep.subr.mxu0 0.0
        %398 = vmatpush1.msra.mxu0 %v298
        %399 = vmatprep.subr.mxu0 0.0
        %400 = vmatpush1.msra.mxu0 %v297
        %401 = vmatprep.subr.mxu0 0.0
        %402 = vmatpush1.msra.mxu0 %v296
        %403 = vmatprep.subr.mxu0 0.0
        %404 = vmatpush1.msra.mxu0 %v295
        %405 = vmatprep.subr.mxu0 0.0
        %406 = vmatpush1.msra.mxu0 %v294
        %407 = vmatprep.subr.mxu0 0.0
        %408 = vmatpush1.msra.mxu0 %v293
        %409 = vmatprep.subr.mxu0 0.0
        %410 = vmatpush1.msra.mxu0 %v292
        %411 = vmatprep.subr.mxu0 0.0
        %412 = vmatpush1.msra.mxu0 %v291
        %413 = vmatprep.subr.mxu0 0.0
        %414 = vmatpush1.msra.mxu0 %v290
        %415 = vmatprep.subr.mxu0 0.0
        %416 = vmatpush1.msra.mxu0 %v289
        %417 = vmatprep.subr.mxu0 0.0
        %418 = vmatpush1.msra.mxu0 %v288
        %419 = vmatprep.subr.mxu0 0.0
        %420 = vmatpush1.msra.mxu0 %v287
        %421 = vmatprep.subr.mxu0 0.0
        %422 = vmatpush1.msra.mxu0 %v286
        %423 = vmatprep.subr.mxu0 0.0
        %424 = vmatpush2.msra.mxu0 0.0
        %425 = vmatprep.subr.mxu0 0.0
        %426 = vmatpush2.msra.mxu0 0.0
        %427 = vmatprep.subr.mxu0 0.0
        %428 = vmatpush2.msra.mxu0 0.0
        %429 = vmatprep.subr.mxu0 0.0
        %430 = vmatpush2.msra.mxu0 0.0
        %431 = vmatprep.subr.mxu0 0.0
        %432 = vmatpush2.msra.mxu0 0.0
        %433 = vmatprep.subr.mxu0 0.0
        %434 = vmatpush2.msra.mxu0 0.0
        %435 = vmatprep.subr.mxu0 0.0
        %436 = vmatpush2.msra.mxu0 0.0
        %437 = vmatprep.subr.mxu0 0.0
        %438 = vmatpush2.msra.mxu0 0.0
        %439 = vmatprep.subr.mxu0 0.0
        %440 = vmatpush2.msra.mxu0 0.0
        %441 = vmatprep.subr.mxu0 0.0
        %442 = vmatpush2.msra.mxu0 0.0
        %443 = vmatprep.subr.mxu0 0.0
        %444 = vmatpush2.msra.mxu0 0.0
        %445 = vmatprep.subr.mxu0 0.0
        %446 = vmatpush2.msra.mxu0 0.0
        %447 = vmatprep.subr.mxu0 0.0
        %448 = vmatpush2.msra.mxu0 0.0
        %449 = vmatprep.subr.mxu0 0.0
        %450 = vmatpush2.msra.mxu0 0.0
        %451 = vmatprep.subr.mxu0 0.0
        %452 = vmatpush2.msra.mxu0 0.0
        %453 = vmatprep.subr.mxu0 0.0
        %454 = vmatpush2.msra.mxu0 0.0
        %455 = vmatprep.mubr.f32.mxu0 0.0
        %456 = vmatmul.mubr.f32.gmra.mxu0 %v383
        %v457 = vpop.f32.mrf.mxu0
        %v458 = vadd.f32 %v389, %v457
        %v459 = vpop.f32.mrf.mxu0
        %460 = vdwg.mxu0
        %461 = vst [vmem:[%s268] sm:$0xff] %v458
        %s462 = sand.u32 %s141, 1
        %s463 = scalar_lea.sflag [#allocation4], %s462
        %s464 = sand.u32 %s141, 1
        %s465 = smul.addr %s464, 8
        %s466 = scalar_lea.vmem [#allocation8], %s465
        // Predicated region
        $region53: #{tpu_custom_call.1} parent=39 // pred_check
          %p467 = pneg %p151
        $region54: #{tpu_custom_call.1} parent=39 // pred_check_branch
          %469 = sbr.rel (%p467) target = $region56
        $region55: #{tpu_custom_call.1} parent=39 // pred_region
          %s471 = ssub.s32 128, 128
          %472 = vsyncadd %s463, %s471
          %s473 = smul.addr %s23, 128
          %s474 = scalar_lea.hbm %s5, %s473
          %s476 = sshll.u32 %s466, 4
          %s477 = int_to_ptr.vmem [resolvable:$true] %s476
          %479 = dma.vmem_to_hbm [thread:$0]  %s477, 128, %s474, %s463
        $region56: #{tpu_custom_call.1} parent=39 // pred_fallthru
          _
      $region40: #{tpu_custom_call.1} parent=5 // pred_fallthru
        _
      %p480 = scmp.le.s32.totalorder 2, %s18
      // Predicated region
      $region57: #{tpu_custom_call.1} parent=5 // pred_check
        %p481 = pneg %p480
      $region58: #{tpu_custom_call.1} parent=5 // pred_check_branch
        %483 = sbr.rel (%p481) target = $region60
      $region59: #{tpu_custom_call.1} parent=5 // pred_region
        %s484 = ssub.s32 %s18, 2
        // Predicated region
        $region61: #{tpu_custom_call.1} parent=59 // pred_check
          %p485 = pneg %p157
        $region62: #{tpu_custom_call.1} parent=59 // pred_check_branch
          %487 = sbr.rel (%p485) target = $region64
        $region63: #{tpu_custom_call.1} parent=59 // pred_region
          %s488 = sand.u32 %s142, 1
          %s489 = scalar_lea.sflag [#allocation4], %s488
          %s490 = sand.u32 %s142, 1
          %s491 = smul.addr %s490, 8
          %s492 = scalar_lea.vmem [#allocation8], %s491
          %493 = dma.done %s489, 128
        $region64: #{tpu_custom_call.1} parent=59 // pred_fallthru
          _
      $region60: #{tpu_custom_call.1} parent=5 // pred_fallthru
        _
    $region6: #{tpu_custom_call.1} parent=1 // loop_footer
      %s22 = sadd.s32 1, %s18
    $region7: #{tpu_custom_call.1} parent=1 // loop_footer_branch
      %17 = sbr.rel target = $region3
    $region8: #{tpu_custom_call.1} parent=1 // loop_exit
      _
    %494 = vsyncpa [#allocation3], 1
    %s495 = scalar_lea.sflag [#allocation3], 1
    %496 = vsyncpa %s495, 1
    %497 = vsyncpa [#allocation6], 1
    %498 = vsyncpa [#allocation4], 1
    %s499 = scalar_lea.sflag [#allocation4], 1
    %500 = vsyncpa %s499, 1

</llo_original>
